<compile_context>
chip_gen: v7x
topology: tpu7x:2x2x1
jax: 0.10.0
libtpu: 0.0.40
codegen_flags: <defaults>
</compile_context>

<pallas_src>
import functools

import jax
import jax.numpy as jnp
from jax.experimental import pallas as pl
from jax.experimental.pallas import tpu as pltpu


def gcn_kernel(x_ref, w1l_ref, b1l_ref, w1r_ref, b1r_ref, w2_ref, b2_ref,
               wmask_ref, o_ref, *, k, p, W, nb):
    """One grid step = `nb` NCHW images, each stored as (C, H*W).

    x_ref   : (nb, Cin,  HW)  f32
    w1l/w1r : (Cout, k*Cin)   bf16   stage-1 weights, rows = (tap, cin)
    w2      : (Cout, 2*k*Cout) bf16  fused stage-2 weight [w2l ; w2r]
    b1l/b1r/b2 : (Cout, 1)    f32
    wmask   : (k, HW)         bf16   per-tap W-axis validity mask (1/0)
    o_ref   : (nb, Cout, HW)  f32
    """
    cin = x_ref.shape[-2]
    cout = o_ref.shape[-2]
    HW = x_ref.shape[-1]
    mm = w1l_ref.dtype            # bf16 matmul-input dtype (f32 accumulation)
    f32 = jnp.float32

    w1l = w1l_ref[...]
    w1r = w1r_ref[...]
    w2 = w2_ref[...]
    b1l = b1l_ref[...]
    b1r = b1r_ref[...]
    b2 = b2_ref[...]
    wmask = wmask_ref[...]        # (k, HW)

    # Zero slabs used to emulate PyTorch's zero padding via lane concatenation.
    zh_in = jnp.zeros((cin, p * W), mm)    # H-padding of x   (whole rows)
    zw_in = jnp.zeros((cin, p), mm)        # W-padding of x   (global ends; mask fixes row wrap)
    zh_mid = jnp.zeros((cout, p * W), mm)  # H-padding of t2
    zw_mid = jnp.zeros((cout, p), mm)      # W-padding of t1

    for b in range(nb):                    # static unroll over images in the block
        x = x_ref[b].astype(mm)            # (Cin, HW)

        # ---- branch L stage 1: (k,1) conv along H -> single MXU matmul ----
        # shift along H == shift by whole rows (t*W columns) in the flat layout
        xpad_h = jnp.concatenate([zh_in, x, zh_in], axis=1)              # (Cin, HW + 2pW)
        xcat_l = jnp.concatenate(
            [xpad_h[:, t * W: t * W + HW] for t in range(k)], axis=0)    # (k*Cin, HW)
        t1 = jnp.dot(w1l, xcat_l, preferred_element_type=f32) + b1l      # (Cout, HW) f32

        # ---- branch R stage 1: (1,k) conv along W -> single MXU matmul ----
        # shift along W == shift by t columns; wmask zeroes taps that cross a
        # row boundary (== PyTorch's zero padding along W).
        xpad_w = jnp.concatenate([zw_in, x, zw_in], axis=1)              # (Cin, HW + 2p)
        xcat_r = jnp.concatenate(
            [xpad_w[:, t: t + HW] * wmask[t:t + 1, :] for t in range(k)],
            axis=0)                                                       # (k*Cin, HW)
        t2 = jnp.dot(w1r, xcat_r, preferred_element_type=f32) + b1r      # (Cout, HW) f32

        # ---- fused stage 2: conv_l2(t1) + conv_r2(t2) in ONE matmul ----
        t1m = t1.astype(mm)
        t2m = t2.astype(mm)
        t1pad_w = jnp.concatenate([zw_mid, t1m, zw_mid], axis=1)
        t2pad_h = jnp.concatenate([zh_mid, t2m, zh_mid], axis=1)
        ycat = jnp.concatenate(
            [t1pad_w[:, t: t + HW] * wmask[t:t + 1, :] for t in range(k)]
            + [t2pad_h[:, t * W: t * W + HW] for t in range(k)],
            axis=0)                                                       # (2k*Cout, HW)
        out = jnp.dot(w2, ycat, preferred_element_type=f32) + b2          # (Cout, HW) f32

        o_ref[b] = out                     # single, lane-dense store per image


def gcn_pallas(x_nchw, params, *, k=3, p=1, compute_dtype=jnp.bfloat16,
               images_per_step=1):
    """x_nchw: (N, Cin, H, W) float32. Returns (N, Cout, H1, W2) float32."""
    wl1, bl1, wl2, bl2, wr1, br1, wr2, br2 = params
    N, Cin, H, W = x_nchw.shape
    Cout = wl1.shape[0]
    H1 = H + 2 * p - k + 1
    W2 = W + 2 * p - k + 1
    # Fused flat-spatial kernel assumes 'same' spatial convs (GCN's usage).
    assert H1 == H and W2 == W, "gcn_pallas requires 2*padding == k-1"
    assert N % images_per_step == 0
    nb = images_per_step
    HW = H * W

    # Free row-major reshape (no HBM copy): NCHW -> (N, C, H*W).
    x2d = x_nchw.reshape(N, Cin, HW)

    # Repack PyTorch OIHW weights so column order = (tap-major, channel-minor),
    # matching the in-kernel concat row order.  W1l[co, t*Cin+ci] = wl1[co,ci,t,0].
    w1l = jnp.transpose(wl1[:, :, :, 0], (0, 2, 1)).reshape(Cout, k * Cin).astype(compute_dtype)
    w1r = jnp.transpose(wr1[:, :, 0, :], (0, 2, 1)).reshape(Cout, k * Cin).astype(compute_dtype)
    w2l = jnp.transpose(wl2[:, :, 0, :], (0, 2, 1)).reshape(Cout, k * Cout)
    w2r = jnp.transpose(wr2[:, :, :, 0], (0, 2, 1)).reshape(Cout, k * Cout)
    w2 = jnp.concatenate([w2l, w2r], axis=1).astype(compute_dtype)   # fused stage-2 weight
    b1l = bl1.reshape(Cout, 1).astype(jnp.float32)
    b1r = br1.reshape(Cout, 1).astype(jnp.float32)
    b2 = (bl2 + br2).reshape(Cout, 1).astype(jnp.float32)            # 2nd-stage biases just add

    # Per-tap W-axis validity mask over the flattened spatial index:
    # mask[t, i*W + j] = 1 iff 0 <= j + t - p < W  (shared by conv_r1 / conv_l2).
    j = jnp.arange(W)
    wmask = jnp.stack(
        [((j + t - p >= 0) & (j + t - p < W)).astype(compute_dtype) for t in range(k)],
        axis=0)                                    # (k, W)
    wmask = jnp.tile(wmask, (1, H))                # (k, H*W)

    out2d = pl.pallas_call(
        functools.partial(gcn_kernel, k=k, p=p, W=W, nb=nb),
        out_shape=jax.ShapeDtypeStruct((N, Cout, HW), jnp.float32),
        grid_spec=pltpu.PrefetchScalarGridSpec(
            num_scalar_prefetch=0,
            grid=(N // nb,),                       # >= 2 steps so both v7x TCs get work
            in_specs=[
                pl.BlockSpec((nb, Cin, HW), lambda n: (n, 0, 0)),        # x block
                pl.BlockSpec((Cout, k * Cin), lambda n: (0, 0)),         # w1l (resident)
                pl.BlockSpec((Cout, 1), lambda n: (0, 0)),               # b1l
                pl.BlockSpec((Cout, k * Cin), lambda n: (0, 0)),         # w1r
                pl.BlockSpec((Cout, 1), lambda n: (0, 0)),               # b1r
                pl.BlockSpec((Cout, 2 * k * Cout), lambda n: (0, 0)),    # fused w2
                pl.BlockSpec((Cout, 1), lambda n: (0, 0)),               # bl2 + br2
                pl.BlockSpec((k, HW), lambda n: (0, 0)),                 # tap mask
            ],
            out_specs=pl.BlockSpec((nb, Cout, HW), lambda n: (n, 0, 0)),
        ),
        compiler_params=pltpu.CompilerParams(
            dimension_semantics=("parallel",),     # megacore sharding on v7x
            vmem_limit_bytes=32 * 1024 * 1024,     # explicit, safe on v5e/v6e/v7x
        ),
    )(x2d, w1l, b1l, w1r, b1r, w2, b2, wmask)

    # Free reshape back to NCHW -- no transpose passes anywhere.
    return out2d.reshape(N, Cout, H1, W2)


def gcn_reference(x_nchw, params, *, k=3, p=1):
    """Pure-XLA reference matching PyTorch nn.Conv2d semantics (NCHW / OIHW)."""
    wl1, bl1, wl2, bl2, wr1, br1, wr2, br2 = params

    def conv(x, w, b, pad):
        y = jax.lax.conv_general_dilated(
            x, w, window_strides=(1, 1),
            padding=((pad[0], pad[0]), (pad[1], pad[1])),
            dimension_numbers=('NCHW', 'OIHW', 'NCHW'))
        return y + b[None, :, None, None]

    x1 = conv(x_nchw, wl1, bl1, (p, 0))
    x1 = conv(x1, wl2, bl2, (0, p))
    x2 = conv(x_nchw, wr1, br1, (0, p))
    x2 = conv(x2, wr2, br2, (p, 0))
    return x1 + x2


def init_params(key, in_channels, out_channels, k):
    """Deterministic synthetic parameters with PyTorch Conv2d weight shapes."""
    ks = jax.random.split(key, 8)

    def u(kk, shape, fan_in):
        bound = 1.0 / jnp.sqrt(float(fan_in))
        return jax.random.uniform(kk, shape, jnp.float32, -bound, bound)

    wl1 = u(ks[0], (out_channels, in_channels, k, 1), in_channels * k)
    bl1 = u(ks[1], (out_channels,), in_channels * k)
    wl2 = u(ks[2], (out_channels, out_channels, 1, k), out_channels * k)
    bl2 = u(ks[3], (out_channels,), out_channels * k)
    wr1 = u(ks[4], (out_channels, in_channels, 1, k), in_channels * k)
    br1 = u(ks[5], (out_channels,), in_channels * k)
    wr2 = u(ks[6], (out_channels, out_channels, k, 1), out_channels * k)
    br2 = u(ks[7], (out_channels,), out_channels * k)
    return (wl1, bl1, wl2, bl2, wr1, br1, wr2, br2)


if __name__ == "__main__":
    N, Cin, Cout, H, W = 2, 4, 8, 16, 16
    k, p = 3, 1

    key = jax.random.PRNGKey(0)
    kx, kp = jax.random.split(key)
    x = jax.random.normal(kx, (N, Cin, H, W), jnp.float32)   # NCHW like PyTorch
    params = init_params(kp, Cin, Cout, k)

    out = jax.block_until_ready(gcn_pallas(x, params, k=k, p=p))
    ref = jax.block_until_ready(gcn_reference(x, params, k=k, p=p))

    assert out.shape == ref.shape, (out.shape, ref.shape)
    # bf16 MXU matmul inputs (f32 accumulation) vs a pure-f32 XLA reference.
    max_err = float(jnp.max(jnp.abs(out - ref)))
    assert max_err < 5e-2, max_err

    print("KERNEL_OK")
</pallas_src>

<mosaic_0001>
module attributes {stable_mosaic.version = 11 : i64} {
  func.func @gcn_kernel(%arg0: i32, %arg1: memref<1x4x256xf32, #tpu.memory_space<vmem>>, %arg2: memref<8x12xbf16, #tpu.memory_space<vmem>>, %arg3: memref<8x1xf32, #tpu.memory_space<vmem>>, %arg4: memref<8x12xbf16, #tpu.memory_space<vmem>>, %arg5: memref<8x1xf32, #tpu.memory_space<vmem>>, %arg6: memref<8x48xbf16, #tpu.memory_space<vmem>>, %arg7: memref<8x1xf32, #tpu.memory_space<vmem>>, %arg8: memref<3x256xbf16, #tpu.memory_space<vmem>>, %arg9: memref<1x8x256xf32, #tpu.memory_space<vmem>>) attributes {dimension_semantics = [#tpu.dimension_semantics<parallel>], iteration_bounds = array<i64: 2>, scalar_prefetch = 0 : i64, scratch_operands = 0 : i64, tpu.core_type = #tpu.core_type<tc>, window_params = [{transform_indices = @transform_0, window_bounds = array<i64: 1, 4, 256>}, {pipeline_mode = #tpu.pipeline_mode<synchronous>, transform_indices = @transform_1, window_bounds = array<i64: 8, 12>}, {pipeline_mode = #tpu.pipeline_mode<synchronous>, transform_indices = @transform_2, window_bounds = array<i64: 8, 1>}, {pipeline_mode = #tpu.pipeline_mode<synchronous>, transform_indices = @transform_3, window_bounds = array<i64: 8, 12>}, {pipeline_mode = #tpu.pipeline_mode<synchronous>, transform_indices = @transform_4, window_bounds = array<i64: 8, 1>}, {pipeline_mode = #tpu.pipeline_mode<synchronous>, transform_indices = @transform_5, window_bounds = array<i64: 8, 48>}, {pipeline_mode = #tpu.pipeline_mode<synchronous>, transform_indices = @transform_6, window_bounds = array<i64: 8, 1>}, {pipeline_mode = #tpu.pipeline_mode<synchronous>, transform_indices = @transform_7, window_bounds = array<i64: 3, 256>}, {transform_indices = @transform_8, window_bounds = array<i64: 1, 8, 256>}]} {
    %c0 = arith.constant 0 : index
    %c0_0 = arith.constant 0 : index
    %0 = vector.load %arg2[%c0, %c0_0] : memref<8x12xbf16, #tpu.memory_space<vmem>>, vector<8x12xbf16>
    %c0_1 = arith.constant 0 : index
    %c0_2 = arith.constant 0 : index
    %1 = vector.load %arg4[%c0_1, %c0_2] : memref<8x12xbf16, #tpu.memory_space<vmem>>, vector<8x12xbf16>
    %c0_3 = arith.constant 0 : index
    %c0_4 = arith.constant 0 : index
    %2 = vector.load %arg6[%c0_3, %c0_4] : memref<8x48xbf16, #tpu.memory_space<vmem>>, vector<8x48xbf16>
    %c0_5 = arith.constant 0 : index
    %c0_6 = arith.constant 0 : index
    %3 = vector.load %arg3[%c0_5, %c0_6] : memref<8x1xf32, #tpu.memory_space<vmem>>, vector<8x1xf32>
    %c0_7 = arith.constant 0 : index
    %c0_8 = arith.constant 0 : index
    %4 = vector.load %arg5[%c0_7, %c0_8] : memref<8x1xf32, #tpu.memory_space<vmem>>, vector<8x1xf32>
    %c0_9 = arith.constant 0 : index
    %c0_10 = arith.constant 0 : index
    %5 = vector.load %arg7[%c0_9, %c0_10] : memref<8x1xf32, #tpu.memory_space<vmem>>, vector<8x1xf32>
    %c0_11 = arith.constant 0 : index
    %c0_12 = arith.constant 0 : index
    %6 = vector.load %arg8[%c0_11, %c0_12] : memref<3x256xbf16, #tpu.memory_space<vmem>>, vector<3x256xbf16>
    %cst = arith.constant 0.000000e+00 : bf16
    %7 = vector.broadcast %cst : bf16 to vector<4x16xbf16>
    %cst_13 = arith.constant 0.000000e+00 : bf16
    %8 = vector.broadcast %cst_13 : bf16 to vector<4x1xbf16>
    %cst_14 = arith.constant 0.000000e+00 : bf16
    %9 = vector.broadcast %cst_14 : bf16 to vector<8x16xbf16>
    %cst_15 = arith.constant 0.000000e+00 : bf16
    %10 = vector.broadcast %cst_15 : bf16 to vector<8x1xbf16>
    %c0_16 = arith.constant 0 : index
    %c0_17 = arith.constant 0 : index
    %c0_18 = arith.constant 0 : index
    %11 = vector.load %arg1[%c0_16, %c0_17, %c0_18] : memref<1x4x256xf32, #tpu.memory_space<vmem>>, vector<1x4x256xf32>
    %12 = vector.shape_cast %11 : vector<1x4x256xf32> to vector<4x256xf32>
    %13 = arith.truncf %12 : vector<4x256xf32> to vector<4x256xbf16>
    %14 = tpu.concatenate %7, %13, %7 in 1 : vector<4x16xbf16>, vector<4x256xbf16>, vector<4x16xbf16> -> vector<4x288xbf16>
    %15 = vector.extract_strided_slice %14 {offsets = [0, 0], sizes = [4, 256], strides = [1, 1]} : vector<4x288xbf16> to vector<4x256xbf16>
    %16 = vector.extract_strided_slice %14 {offsets = [0, 16], sizes = [4, 256], strides = [1, 1]} : vector<4x288xbf16> to vector<4x256xbf16>
    %17 = vector.extract_strided_slice %14 {offsets = [0, 32], sizes = [4, 256], strides = [1, 1]} : vector<4x288xbf16> to vector<4x256xbf16>
    %18 = tpu.concatenate %15, %16, %17 in 0 : vector<4x256xbf16>, vector<4x256xbf16>, vector<4x256xbf16> -> vector<12x256xbf16>
    %cst_19 = arith.constant dense<0.000000e+00> : vector<8x256xf32>
    %19 = tpu.matmul %0, %18, %cst_19 {dimension_numbers = #tpu.dot_dimension_numbers<[1], [0], [0], [1], [0, 0, 1, 1], [], []>} : vector<8x12xbf16>, vector<12x256xbf16>, vector<8x256xf32> -> vector<8x256xf32>
    %20 = vector.broadcast %3 : vector<8x1xf32> to vector<8x256xf32>
    %21 = arith.addf %19, %20 : vector<8x256xf32>
    %22 = tpu.concatenate %8, %13, %8 in 1 : vector<4x1xbf16>, vector<4x256xbf16>, vector<4x1xbf16> -> vector<4x258xbf16>
    %23 = vector.extract_strided_slice %22 {offsets = [0, 0], sizes = [4, 256], strides = [1, 1]} : vector<4x258xbf16> to vector<4x256xbf16>
    %24 = vector.extract_strided_slice %6 {offsets = [0, 0], sizes = [1, 256], strides = [1, 1]} : vector<3x256xbf16> to vector<1x256xbf16>
    %25 = vector.broadcast %24 : vector<1x256xbf16> to vector<4x256xbf16>
    %26 = arith.mulf %23, %25 : vector<4x256xbf16>
    %27 = vector.extract_strided_slice %22 {offsets = [0, 1], sizes = [4, 256], strides = [1, 1]} : vector<4x258xbf16> to vector<4x256xbf16>
    %28 = vector.extract_strided_slice %6 {offsets = [1, 0], sizes = [1, 256], strides = [1, 1]} : vector<3x256xbf16> to vector<1x256xbf16>
    %29 = vector.broadcast %28 : vector<1x256xbf16> to vector<4x256xbf16>
    %30 = arith.mulf %27, %29 : vector<4x256xbf16>
    %31 = vector.extract_strided_slice %22 {offsets = [0, 2], sizes = [4, 256], strides = [1, 1]} : vector<4x258xbf16> to vector<4x256xbf16>
    %32 = vector.extract_strided_slice %6 {offsets = [2, 0], sizes = [1, 256], strides = [1, 1]} : vector<3x256xbf16> to vector<1x256xbf16>
    %33 = vector.broadcast %32 : vector<1x256xbf16> to vector<4x256xbf16>
    %34 = arith.mulf %31, %33 : vector<4x256xbf16>
    %35 = tpu.concatenate %26, %30, %34 in 0 : vector<4x256xbf16>, vector<4x256xbf16>, vector<4x256xbf16> -> vector<12x256xbf16>
    %cst_20 = arith.constant dense<0.000000e+00> : vector<8x256xf32>
    %36 = tpu.matmul %1, %35, %cst_20 {dimension_numbers = #tpu.dot_dimension_numbers<[1], [0], [0], [1], [0, 0, 1, 1], [], []>} : vector<8x12xbf16>, vector<12x256xbf16>, vector<8x256xf32> -> vector<8x256xf32>
    %37 = vector.broadcast %4 : vector<8x1xf32> to vector<8x256xf32>
    %38 = arith.addf %36, %37 : vector<8x256xf32>
    %39 = arith.truncf %21 : vector<8x256xf32> to vector<8x256xbf16>
    %40 = arith.truncf %38 : vector<8x256xf32> to vector<8x256xbf16>
    %41 = tpu.concatenate %10, %39, %10 in 1 : vector<8x1xbf16>, vector<8x256xbf16>, vector<8x1xbf16> -> vector<8x258xbf16>
    %42 = tpu.concatenate %9, %40, %9 in 1 : vector<8x16xbf16>, vector<8x256xbf16>, vector<8x16xbf16> -> vector<8x288xbf16>
    %43 = vector.extract_strided_slice %41 {offsets = [0, 0], sizes = [8, 256], strides = [1, 1]} : vector<8x258xbf16> to vector<8x256xbf16>
    %44 = vector.extract_strided_slice %6 {offsets = [0, 0], sizes = [1, 256], strides = [1, 1]} : vector<3x256xbf16> to vector<1x256xbf16>
    %45 = vector.broadcast %44 : vector<1x256xbf16> to vector<8x256xbf16>
    %46 = arith.mulf %43, %45 : vector<8x256xbf16>
    %47 = vector.extract_strided_slice %41 {offsets = [0, 1], sizes = [8, 256], strides = [1, 1]} : vector<8x258xbf16> to vector<8x256xbf16>
    %48 = vector.extract_strided_slice %6 {offsets = [1, 0], sizes = [1, 256], strides = [1, 1]} : vector<3x256xbf16> to vector<1x256xbf16>
    %49 = vector.broadcast %48 : vector<1x256xbf16> to vector<8x256xbf16>
    %50 = arith.mulf %47, %49 : vector<8x256xbf16>
    %51 = vector.extract_strided_slice %41 {offsets = [0, 2], sizes = [8, 256], strides = [1, 1]} : vector<8x258xbf16> to vector<8x256xbf16>
    %52 = vector.extract_strided_slice %6 {offsets = [2, 0], sizes = [1, 256], strides = [1, 1]} : vector<3x256xbf16> to vector<1x256xbf16>
    %53 = vector.broadcast %52 : vector<1x256xbf16> to vector<8x256xbf16>
    %54 = arith.mulf %51, %53 : vector<8x256xbf16>
    %55 = vector.extract_strided_slice %42 {offsets = [0, 0], sizes = [8, 256], strides = [1, 1]} : vector<8x288xbf16> to vector<8x256xbf16>
    %56 = vector.extract_strided_slice %42 {offsets = [0, 16], sizes = [8, 256], strides = [1, 1]} : vector<8x288xbf16> to vector<8x256xbf16>
    %57 = vector.extract_strided_slice %42 {offsets = [0, 32], sizes = [8, 256], strides = [1, 1]} : vector<8x288xbf16> to vector<8x256xbf16>
    %58 = tpu.concatenate %46, %50, %54, %55, %56, %57 in 0 : vector<8x256xbf16>, vector<8x256xbf16>, vector<8x256xbf16>, vector<8x256xbf16>, vector<8x256xbf16>, vector<8x256xbf16> -> vector<48x256xbf16>
    %cst_21 = arith.constant dense<0.000000e+00> : vector<8x256xf32>
    %59 = tpu.matmul %2, %58, %cst_21 {dimension_numbers = #tpu.dot_dimension_numbers<[1], [0], [0], [1], [0, 0, 1, 1], [], []>} : vector<8x48xbf16>, vector<48x256xbf16>, vector<8x256xf32> -> vector<8x256xf32>
    %60 = vector.broadcast %5 : vector<8x1xf32> to vector<8x256xf32>
    %61 = arith.addf %59, %60 : vector<8x256xf32>
    %c0_22 = arith.constant 0 : index
    %c0_23 = arith.constant 0 : index
    %c0_24 = arith.constant 0 : index
    %62 = vector.load %arg9[%c0_22, %c0_23, %c0_24] : memref<1x8x256xf32, #tpu.memory_space<vmem>>, vector<1x8x256xf32>
    %63 = vector.shape_cast %62 : vector<1x8x256xf32> to vector<8x256xf32>
    %64 = vector.shape_cast %61 : vector<8x256xf32> to vector<1x8x256xf32>
    tpu.vector_store %arg9[%c0_22, %c0_23, %c0_24], %64 {strides = array<i32>} : memref<1x8x256xf32, #tpu.memory_space<vmem>>, vector<1x8x256xf32>,
    return
  }
  func.func @transform_0(%arg0: i32) -> (i32, i32, i32) {
    %c0_i32 = arith.constant 0 : i32
    %c0_i32_0 = arith.constant 0 : i32
    %c0_i32_1 = arith.constant 0 : i32
    return %arg0, %c0_i32, %c0_i32_0 : i32, i32, i32
  }
  func.func @transform_1(%arg0: i32) -> (i32, i32) {
    %c0_i32 = arith.constant 0 : i32
    %c0_i32_0 = arith.constant 0 : i32
    %c0_i32_1 = arith.constant 0 : i32
    return %c0_i32, %c0_i32_0 : i32, i32
  }
  func.func @transform_2(%arg0: i32) -> (i32, i32) {
    %c0_i32 = arith.constant 0 : i32
    %c0_i32_0 = arith.constant 0 : i32
    %c0_i32_1 = arith.constant 0 : i32
    return %c0_i32, %c0_i32_0 : i32, i32
  }
  func.func @transform_3(%arg0: i32) -> (i32, i32) {
    %c0_i32 = arith.constant 0 : i32
    %c0_i32_0 = arith.constant 0 : i32
    %c0_i32_1 = arith.constant 0 : i32
    return %c0_i32, %c0_i32_0 : i32, i32
  }
  func.func @transform_4(%arg0: i32) -> (i32, i32) {
    %c0_i32 = arith.constant 0 : i32
    %c0_i32_0 = arith.constant 0 : i32
    %c0_i32_1 = arith.constant 0 : i32
    return %c0_i32, %c0_i32_0 : i32, i32
  }
  func.func @transform_5(%arg0: i32) -> (i32, i32) {
    %c0_i32 = arith.constant 0 : i32
    %c0_i32_0 = arith.constant 0 : i32
    %c0_i32_1 = arith.constant 0 : i32
    return %c0_i32, %c0_i32_0 : i32, i32
  }
  func.func @transform_6(%arg0: i32) -> (i32, i32) {
    %c0_i32 = arith.constant 0 : i32
    %c0_i32_0 = arith.constant 0 : i32
    %c0_i32_1 = arith.constant 0 : i32
    return %c0_i32, %c0_i32_0 : i32, i32
  }
  func.func @transform_7(%arg0: i32) -> (i32, i32) {
    %c0_i32 = arith.constant 0 : i32
    %c0_i32_0 = arith.constant 0 : i32
    %c0_i32_1 = arith.constant 0 : i32
    return %c0_i32, %c0_i32_0 : i32, i32
  }
  func.func @transform_8(%arg0: i32) -> (i32, i32, i32) {
    %c0_i32 = arith.constant 0 : i32
    %c0_i32_0 = arith.constant 0 : i32
    %c0_i32_1 = arith.constant 0 : i32
    return %arg0, %c0_i32, %c0_i32_0 : i32, i32, i32
  }
}

</mosaic_0001>

<llo_original>
// kernel: tpu_custom_call.1
$region0: #{tpu_custom_call.1}
  #allocation0 [shape = 'u32[]', space=smem, size = 0x4, offset = 0x4, fixed_abs, tag = 'smem constant byte address 0x4 - core index']
  #allocation1 [shape = 'u32[144,128]{1,0:T(1,128)}', space=vmem, size = 0x12000, scoped, tag = 'internal scratch']
  %s0 = inlined_call_operand.vmem [shape: f32[2,4,256], index: 0, kind: input, shape index: {}]
  %s1 = inlined_call_operand.vmem [shape: bf16[8,12], index: 1, kind: input, shape index: {}]
  %s2 = inlined_call_operand.vmem [shape: f32[8,1], index: 2, kind: input, shape index: {}]
  %s3 = inlined_call_operand.vmem [shape: bf16[8,12], index: 3, kind: input, shape index: {}]
  %s4 = inlined_call_operand.vmem [shape: f32[8,1], index: 4, kind: input, shape index: {}]
  %s5 = inlined_call_operand.vmem [shape: bf16[8,48], index: 5, kind: input, shape index: {}]
  %s6 = inlined_call_operand.vmem [shape: f32[8,1], index: 6, kind: input, shape index: {}]
  %s7 = inlined_call_operand.vmem [shape: bf16[3,256], index: 7, kind: input, shape index: {}]
  %s8 = inlined_call_operand.hbm [shape: f32[2,8,256], index: 8, kind: output, shape index: {}]
  %s9 = sld [smem:[#allocation0]]
  $region65: #{tpu_custom_call.1} parent=0
    _
  %s11 = ssub.s32 1, %s9
  %s12 = scalar_select 0, %s11, %s9
  $region1: #{tpu_custom_call.1} parent=0
    #allocation2 [shape = 'u8[16384]{0}', space=vmem, size = 0x4000, scoped, tag = 'output window, operand 0']
    #allocation3 [shape = 's32[2]{0}', space=sflag, size = 0x8, scoped, tag = 'scoped memory for tpu_custom_call.1']
    %13 = vsyncpa [#allocation3], 0
    %s14 = scalar_lea.sflag [#allocation3], 1
    %15 = vsyncpa %s14, 0
    loop: start=0, step=1, limit=4
    $region2: #{tpu_custom_call.1} parent=1 // loop_pre_header
      _
    $region3: #{tpu_custom_call.1} parent=1 // loop_header
      %s17 = sphi 0, %s21
      %p18 = scmp.ge.s32.totalorder %s17, 4
      %s27 = sphi 0, %s29
      %s30 = sphi 0, %s27
      %s31 = sphi 0, %s30
      %s47 = sphi 0, %s31
      %s51 = sphi 0, %s51
      %s53 = sphi 0, %s51
      %s54 = sphi 0, %s53
      %s68 = sphi 0, %s54
      %s72 = sphi 0, %s72
      %s74 = sphi 0, %s72
      %s75 = sphi 0, %s74
      %s89 = sphi 0, %s75
      %s93 = sphi 0, %s93
      %s95 = sphi 0, %s93
      %s96 = sphi 0, %s95
      %s110 = sphi 0, %s96
      %s114 = sphi 0, %s114
      %s116 = sphi 0, %s114
      %s117 = sphi 0, %s116
      %s131 = sphi 0, %s117
      %s135 = sphi 0, %s135
      %s137 = sphi 0, %s135
      %s138 = sphi 0, %s137
      %s152 = sphi 0, %s138
      %s156 = sphi 0, %s156
      %s158 = sphi 0, %s156
      %s159 = sphi 0, %s158
      %s173 = sphi 0, %s159
      %s177 = sphi 0, %s177
      %s179 = sphi 0, %s177
      %s180 = sphi 0, %s179
      %s194 = sphi 0, %s180
      %s200 = sphi 0, %s202
      %s203 = sphi 0, %s200
      %s204 = sphi 0, %s203
      %s220 = sphi 0, %s204
    $region4: #{tpu_custom_call.1} parent=1 // loop_header_branch
      %20 = sbr.rel (%p18) target = $region8
    $region5: #{tpu_custom_call.1} parent=1 // loop_body
      %s22 = ssub.s32 %s17, 1
      %s23 = ssub.s32 %s17, 2
      %s24 = sadd.s32 %s17, 1
      %s25 = ssub.s32 %s17, %s24
      %p26 = scmp.eq.s32.totalorder %s25, 0
      %s28 = sadd.s32 %s27, 1
      %s29 = scalar_select %p26, %s27, %s28
      %p32 = pneg %p26
      %p33 = scmp.eq.s32.totalorder %s17, 1
      %p34 = por %p32, %p33
      %p35 = scmp.ne.s32.totalorder %s27, %s30
      %p36 = scmp.eq.s32.totalorder %s17, 0
      %p37 = por %p35, %p36
      %p38 = scmp.ne.s32.totalorder %s27, %s30
      %p39 = scmp.eq.s32.totalorder %s22, 1
      %p40 = por %p38, %p39
      %p41 = scmp.ne.s32.totalorder %s30, %s31
      %p42 = scmp.eq.s32.totalorder %s22, 0
      %p43 = por %p41, %p42
      %p44 = scmp.ne.s32.totalorder %s30, %s31
      %p45 = scmp.eq.s32.totalorder %s23, 1
      %p46 = por %p44, %p45
      %p48 = scmp.ne.s32.totalorder %s31, %s47
      %p49 = scmp.eq.s32.totalorder %s23, 0
      %p50 = por %p48, %p49
      %s52 = sadd.s32 %s51, 1
      %p55 = scmp.eq.s32.totalorder %s17, 1
      %p56 = scmp.ne.s32.totalorder %s51, %s53
      %p57 = scmp.eq.s32.totalorder %s17, 0
      %p58 = por %p56, %p57
      %p59 = scmp.ne.s32.totalorder %s51, %s53
      %p60 = scmp.eq.s32.totalorder %s22, 1
      %p61 = por %p59, %p60
      %p62 = scmp.ne.s32.totalorder %s53, %s54
      %p63 = scmp.eq.s32.totalorder %s22, 0
      %p64 = por %p62, %p63
      %p65 = scmp.ne.s32.totalorder %s53, %s54
      %p66 = scmp.eq.s32.totalorder %s23, 1
      %p67 = por %p65, %p66
      %p69 = scmp.ne.s32.totalorder %s54, %s68
      %p70 = scmp.eq.s32.totalorder %s23, 0
      %p71 = por %p69, %p70
      %s73 = sadd.s32 %s72, 1
      %p76 = scmp.eq.s32.totalorder %s17, 1
      %p77 = scmp.ne.s32.totalorder %s72, %s74
      %p78 = scmp.eq.s32.totalorder %s17, 0
      %p79 = por %p77, %p78
      %p80 = scmp.ne.s32.totalorder %s72, %s74
      %p81 = scmp.eq.s32.totalorder %s22, 1
      %p82 = por %p80, %p81
      %p83 = scmp.ne.s32.totalorder %s74, %s75
      %p84 = scmp.eq.s32.totalorder %s22, 0
      %p85 = por %p83, %p84
      %p86 = scmp.ne.s32.totalorder %s74, %s75
      %p87 = scmp.eq.s32.totalorder %s23, 1
      %p88 = por %p86, %p87
      %p90 = scmp.ne.s32.totalorder %s75, %s89
      %p91 = scmp.eq.s32.totalorder %s23, 0
      %p92 = por %p90, %p91
      %s94 = sadd.s32 %s93, 1
      %p97 = scmp.eq.s32.totalorder %s17, 1
      %p98 = scmp.ne.s32.totalorder %s93, %s95
      %p99 = scmp.eq.s32.totalorder %s17, 0
      %p100 = por %p98, %p99
      %p101 = scmp.ne.s32.totalorder %s93, %s95
      %p102 = scmp.eq.s32.totalorder %s22, 1
      %p103 = por %p101, %p102
      %p104 = scmp.ne.s32.totalorder %s95, %s96
      %p105 = scmp.eq.s32.totalorder %s22, 0
      %p106 = por %p104, %p105
      %p107 = scmp.ne.s32.totalorder %s95, %s96
      %p108 = scmp.eq.s32.totalorder %s23, 1
      %p109 = por %p107, %p108
      %p111 = scmp.ne.s32.totalorder %s96, %s110
      %p112 = scmp.eq.s32.totalorder %s23, 0
      %p113 = por %p111, %p112
      %s115 = sadd.s32 %s114, 1
      %p118 = scmp.eq.s32.totalorder %s17, 1
      %p119 = scmp.ne.s32.totalorder %s114, %s116
      %p120 = scmp.eq.s32.totalorder %s17, 0
      %p121 = por %p119, %p120
      %p122 = scmp.ne.s32.totalorder %s114, %s116
      %p123 = scmp.eq.s32.totalorder %s22, 1
      %p124 = por %p122, %p123
      %p125 = scmp.ne.s32.totalorder %s116, %s117
      %p126 = scmp.eq.s32.totalorder %s22, 0
      %p127 = por %p125, %p126
      %p128 = scmp.ne.s32.totalorder %s116, %s117
      %p129 = scmp.eq.s32.totalorder %s23, 1
      %p130 = por %p128, %p129
      %p132 = scmp.ne.s32.totalorder %s117, %s131
      %p133 = scmp.eq.s32.totalorder %s23, 0
      %p134 = por %p132, %p133
      %s136 = sadd.s32 %s135, 1
      %p139 = scmp.eq.s32.totalorder %s17, 1
      %p140 = scmp.ne.s32.totalorder %s135, %s137
      %p141 = scmp.eq.s32.totalorder %s17, 0
      %p142 = por %p140, %p141
      %p143 = scmp.ne.s32.totalorder %s135, %s137
      %p144 = scmp.eq.s32.totalorder %s22, 1
      %p145 = por %p143, %p144
      %p146 = scmp.ne.s32.totalorder %s137, %s138
      %p147 = scmp.eq.s32.totalorder %s22, 0
      %p148 = por %p146, %p147
      %p149 = scmp.ne.s32.totalorder %s137, %s138
      %p150 = scmp.eq.s32.totalorder %s23, 1
      %p151 = por %p149, %p150
      %p153 = scmp.ne.s32.totalorder %s138, %s152
      %p154 = scmp.eq.s32.totalorder %s23, 0
      %p155 = por %p153, %p154
      %s157 = sadd.s32 %s156, 1
      %p160 = scmp.eq.s32.totalorder %s17, 1
      %p161 = scmp.ne.s32.totalorder %s156, %s158
      %p162 = scmp.eq.s32.totalorder %s17, 0
      %p163 = por %p161, %p162
      %p164 = scmp.ne.s32.totalorder %s156, %s158
      %p165 = scmp.eq.s32.totalorder %s22, 1
      %p166 = por %p164, %p165
      %p167 = scmp.ne.s32.totalorder %s158, %s159
      %p168 = scmp.eq.s32.totalorder %s22, 0
      %p169 = por %p167, %p168
      %p170 = scmp.ne.s32.totalorder %s158, %s159
      %p171 = scmp.eq.s32.totalorder %s23, 1
      %p172 = por %p170, %p171
      %p174 = scmp.ne.s32.totalorder %s159, %s173
      %p175 = scmp.eq.s32.totalorder %s23, 0
      %p176 = por %p174, %p175
      %s178 = sadd.s32 %s177, 1
      %p181 = scmp.eq.s32.totalorder %s17, 1
      %p182 = scmp.ne.s32.totalorder %s177, %s179
      %p183 = scmp.eq.s32.totalorder %s17, 0
      %p184 = por %p182, %p183
      %p185 = scmp.ne.s32.totalorder %s177, %s179
      %p186 = scmp.eq.s32.totalorder %s22, 1
      %p187 = por %p185, %p186
      %p188 = scmp.ne.s32.totalorder %s179, %s180
      %p189 = scmp.eq.s32.totalorder %s22, 0
      %p190 = por %p188, %p189
      %p191 = scmp.ne.s32.totalorder %s179, %s180
      %p192 = scmp.eq.s32.totalorder %s23, 1
      %p193 = por %p191, %p192
      %p195 = scmp.ne.s32.totalorder %s180, %s194
      %p196 = scmp.eq.s32.totalorder %s23, 0
      %p197 = por %p195, %p196
      %s198 = ssub.s32 %s17, %s24
      %p199 = scmp.eq.s32.totalorder %s198, 0
      %s201 = sadd.s32 %s200, 1
      %s202 = scalar_select %p199, %s200, %s201
      %p205 = pneg %p199
      %p206 = scmp.eq.s32.totalorder %s17, 1
      %p207 = por %p205, %p206
      %p208 = scmp.ne.s32.totalorder %s200, %s203
      %p209 = scmp.eq.s32.totalorder %s17, 0
      %p210 = por %p208, %p209
      %p211 = scmp.ne.s32.totalorder %s200, %s203
      %p212 = scmp.eq.s32.totalorder %s22, 1
      %p213 = por %p211, %p212
      %p214 = scmp.ne.s32.totalorder %s203, %s204
      %p215 = scmp.eq.s32.totalorder %s22, 0
      %p216 = por %p214, %p215
      %p217 = scmp.ne.s32.totalorder %s203, %s204
      %p218 = scmp.eq.s32.totalorder %s23, 1
      %p219 = por %p217, %p218
      %p221 = scmp.ne.s32.totalorder %s204, %s220
      %p222 = scmp.eq.s32.totalorder %s23, 0
      %p223 = por %p221, %p222
      %p224 = scmp.le.s32.totalorder 1, %s17
      %p225 = scmp.lt.s32.totalorder %s17, 3
      %p226 = pnand %p224, %p225
      %p227 = pneg %p226
      // Predicated region
      $region9: #{tpu_custom_call.1} parent=5 // pred_check
        _
      $region10: #{tpu_custom_call.1} parent=5 // pred_check_branch
        %229 = sbr.rel (%p226) target = $region12
      $region11: #{tpu_custom_call.1} parent=5 // pred_region
        %s230 = ssub.s32 %s17, 1
        // Predicated region
        $region13: #{tpu_custom_call.1} parent=11 // pred_check
          %p231 = pneg %p64
        $region14: #{tpu_custom_call.1} parent=11 // pred_check_branch
          %233 = sbr.rel (%p231) target = $region16
        $region15: #{tpu_custom_call.1} parent=11 // pred_region
          _
        $region16: #{tpu_custom_call.1} parent=11 // pred_fallthru
          _
        // Predicated region
        $region17: #{tpu_custom_call.1} parent=11 // pred_check
          %p234 = pneg %p85
        $region18: #{tpu_custom_call.1} parent=11 // pred_check_branch
          %236 = sbr.rel (%p234) target = $region20
        $region19: #{tpu_custom_call.1} parent=11 // pred_region
          _
        $region20: #{tpu_custom_call.1} parent=11 // pred_fallthru
          _
        // Predicated region
        $region21: #{tpu_custom_call.1} parent=11 // pred_check
          %p237 = pneg %p106
        $region22: #{tpu_custom_call.1} parent=11 // pred_check_branch
          %239 = sbr.rel (%p237) target = $region24
        $region23: #{tpu_custom_call.1} parent=11 // pred_region
          _
        $region24: #{tpu_custom_call.1} parent=11 // pred_fallthru
          _
        // Predicated region
        $region25: #{tpu_custom_call.1} parent=11 // pred_check
          %p240 = pneg %p127
        $region26: #{tpu_custom_call.1} parent=11 // pred_check_branch
          %242 = sbr.rel (%p240) target = $region28
        $region27: #{tpu_custom_call.1} parent=11 // pred_region
          _
        $region28: #{tpu_custom_call.1} parent=11 // pred_fallthru
          _
        // Predicated region
        $region29: #{tpu_custom_call.1} parent=11 // pred_check
          %p243 = pneg %p148
        $region30: #{tpu_custom_call.1} parent=11 // pred_check_branch
          %245 = sbr.rel (%p243) target = $region32
        $region31: #{tpu_custom_call.1} parent=11 // pred_region
          _
        $region32: #{tpu_custom_call.1} parent=11 // pred_fallthru
          _
        // Predicated region
        $region33: #{tpu_custom_call.1} parent=11 // pred_check
          %p246 = pneg %p169
        $region34: #{tpu_custom_call.1} parent=11 // pred_check_branch
          %248 = sbr.rel (%p246) target = $region36
        $region35: #{tpu_custom_call.1} parent=11 // pred_region
          _
        $region36: #{tpu_custom_call.1} parent=11 // pred_fallthru
          _
        // Predicated region
        $region37: #{tpu_custom_call.1} parent=11 // pred_check
          %p249 = pneg %p190
        $region38: #{tpu_custom_call.1} parent=11 // pred_check_branch
          %251 = sbr.rel (%p249) target = $region40
        $region39: #{tpu_custom_call.1} parent=11 // pred_region
          _
        $region40: #{tpu_custom_call.1} parent=11 // pred_fallthru
          _
      $region12: #{tpu_custom_call.1} parent=5 // pred_fallthru
        _
      %p252 = scmp.lt.s32.totalorder %s17, 2
      // Predicated region
      $region41: #{tpu_custom_call.1} parent=5 // pred_check
        %p253 = pneg %p252
      $region42: #{tpu_custom_call.1} parent=5 // pred_check_branch
        %255 = sbr.rel (%p253) target = $region44
      $region43: #{tpu_custom_call.1} parent=5 // pred_region
        // Predicated region
        $region45: #{tpu_custom_call.1} parent=43 // pred_check
          %p256 = pneg %p37
        $region46: #{tpu_custom_call.1} parent=43 // pred_check_branch
          %258 = sbr.rel (%p256) target = $region48
        $region47: #{tpu_custom_call.1} parent=43 // pred_region
          %p259 = scmp.lt.s32.totalorder %s17, 1
          %s260 = scalar_select %p259, %s17, 1
          %s261 = smul.addr %s260, 2
          %s262 = smul.addr %s261, 4
          %s263 = scalar_lea.vmem %s0, %s262
        $region48: #{tpu_custom_call.1} parent=43 // pred_fallthru
          _
      $region44: #{tpu_custom_call.1} parent=5 // pred_fallthru
        _
      %p264 = scmp.le.s32.totalorder 1, %s17
      %p265 = scmp.lt.s32.totalorder %s17, 3
      %p266 = pnand %p264, %p265
      %p267 = pneg %p266
      // Predicated region
      $region49: #{tpu_custom_call.1} parent=5 // pred_check
        _
      $region50: #{tpu_custom_call.1} parent=5 // pred_check_branch
        %269 = sbr.rel (%p266) target = $region52
      $region51: #{tpu_custom_call.1} parent=5 // pred_region
        %s270 = ssub.s32 %s17, 1
        %p271 = scmp.lt.s32.totalorder %s22, 1
        %s272 = scalar_select %p271, %s22, 1
        %s273 = smul.addr %s272, 2
        %s274 = smul.addr %s273, 4
        %s275 = scalar_lea.vmem %s0, %s274
        %p276 = pneg %p43
        %p277 = pneg %p40
        %p278 = pneg %p64
        %p279 = pneg %p61
        %p280 = pneg %p85
        %p281 = pneg %p82
        %p282 = pneg %p106
        %p283 = pneg %p103
        %p284 = pneg %p127
        %p285 = pneg %p124
        %p286 = pneg %p148
        %p287 = pneg %p145
        %p288 = pneg %p169
        %p289 = pneg %p166
        %p290 = pneg %p190
        %p291 = pneg %p187
        %p292 = pneg %p216
        %p293 = pneg %p213
        %s294 = sand.u32 %s203, 1
        %s295 = scalar_lea.sflag [#allocation3], %s294
        %s296 = sand.u32 %s203, 1
        %s297 = smul.addr %s296, 16
        %s298 = scalar_lea.vmem [#allocation2], %s297
        %p299 = scmp.lt.s32.totalorder %s22, 1
        %s300 = scalar_select %p299, %s22, 1
        %s301 = smul.addr %s300, 2
        %s302 = smul.addr %s301, 4
        %s303 = scalar_lea.vmem %s0, %s302
        %v305 = vld [vmem:[%s1] sm:$0xf]
        %v306 = vld [vmem:[%s3] sm:$0xf]
        %v307 = vld [vmem:[%s5] sm:$0xf]
        %v308 = vld [vmem:[%s2] sm:$0xff]
        %v309 = vld [vmem:[%s4] sm:$0xff]
        %v310 = vld [vmem:[%s6] sm:$0xff]
        %v311 = vld [vmem:[%s7] sm:$0xf]
        %v312 = vld [vmem:[%s303] sm:$0xff]
        %v314 = vcombine.high %v312, %v312
        %v316 = vpack.c.bf16 %v312, %v312
        %v317 = vpack.c.bf16 %v314, %v314
        %320 = vrot.lane.b32.xlu0 %v316, 16
        %v321 = vpop.permute.xlu0 %320
        %322 = vrot.lane.b32.xlu0 %v317, 16
        %v323 = vpop.permute.xlu0 %322
        %vm324 = vcmask 130048
        %v325 = vsel %vm324, %v321, %v323
        %vm326 = vcmask 130048
        %v329 = vsel %vm326, 0, %v321
        %v331 = vsel %vm326, %v323, 0
        %v334 = vrot.slane %v329, 6
        %v335 = vrot.slane %v325, 6
        %v336 = vrot.slane %v331, 6
        %337 = vrot.lane.b32.xlu0 %v334, 112
        %v338 = vpop.permute.xlu0 %337
        %339 = vrot.lane.b32.xlu0 %v335, 112
        %v340 = vpop.permute.xlu0 %339
        %341 = vrot.lane.b32.xlu0 %v336, 112
        %v342 = vpop.permute.xlu0 %341
        %vm343 = vcmask 916480
        %v344 = vsel %vm343, %v338, %v340
        %v345 = vsel %vm343, %v340, %v342
        %v346 = vrot.slane %v329, 4
        %v347 = vrot.slane %v325, 4
        %v348 = vrot.slane %v331, 4
        %349 = vrot.lane.b32.xlu0 %v346, 96
        %v350 = vpop.permute.xlu0 %349
        %351 = vrot.lane.b32.xlu0 %v347, 96
        %v352 = vpop.permute.xlu0 %351
        %353 = vrot.lane.b32.xlu0 %v348, 96
        %v354 = vpop.permute.xlu0 %353
        %vm355 = vcmask 785408
        %v356 = vsel %vm355, %v350, %v352
        %v357 = vsel %vm355, %v352, %v354
        %vm358 = vcmask 1041408
        %v360 = vsel %vm358, %v329, %v344
        %v363 = vsel %vm358, %v325, %v345
        %vm364 = vcmask 1043456
        %v366 = vsel %vm364, %v360, %v356
        %v368 = vsel %vm364, %v363, %v357
        %370 = vset.pattern.permute.xlu0 0
        %371 = vperm.xlu0 %370, %v308
        %v372 = vpop.permute.xlu0 %371
        %vm374 = vcmask 97280
        %v376 = vsel %vm374, %v305, 0
        %vm378 = vcmask 1045504
        %v379 = vsel %vm378, %v366, 0
        %v381 = vsel %vm378, %v368, 0
        %383 = vmatprep.subr.bf16.mxu0 %v381
        %384 = vmatpush1.bf16.msra.mxu0 %v379
        %385 = vmatprep.subr.bf16.mxu0 0
        %386 = vmatpush1.bf16.msra.mxu0 0
        %387 = vmatprep.subr.bf16.mxu0 0
        %388 = vmatpush1.bf16.msra.mxu0 0
        %389 = vmatprep.subr.bf16.mxu0 0
        %390 = vmatpush1.bf16.msra.mxu0 0
        %391 = vmatprep.subr.bf16.mxu0 0
        %392 = vmatpush1.bf16.msra.mxu0 0
        %393 = vmatprep.subr.bf16.mxu0 0
        %394 = vmatpush1.bf16.msra.mxu0 0
        %395 = vmatprep.subr.bf16.mxu0 0
        %396 = vmatpush1.bf16.msra.mxu0 0
        %397 = vmatprep.subr.bf16.mxu0 0
        %398 = vmatpush1.bf16.msra.mxu0 0
        %399 = vmatprep.subr.bf16.mxu0 0
        %400 = vmatpush1.bf16.msra.mxu0 0
        %401 = vmatprep.subr.bf16.mxu0 0
        %402 = vmatpush1.bf16.msra.mxu0 0
        %403 = vmatprep.subr.bf16.mxu0 0
        %404 = vmatpush1.bf16.msra.mxu0 0
        %405 = vmatprep.subr.bf16.mxu0 0
        %406 = vmatpush1.bf16.msra.mxu0 0
        %407 = vmatprep.subr.bf16.mxu0 0
        %408 = vmatpush1.bf16.msra.mxu0 0
        %409 = vmatprep.subr.bf16.mxu0 0
        %410 = vmatpush1.bf16.msra.mxu0 0
        %411 = vmatprep.subr.bf16.mxu0 0
        %412 = vmatpush1.bf16.msra.mxu0 0
        %413 = vmatprep.subr.bf16.mxu0 0
        %414 = vmatpush1.bf16.msra.mxu0 0
        %415 = vmatprep.mubr.bf16.mxu0 0
        %416 = vmatmul.mubr.bf16.gmra.mrb[0].mxu0 %v376
        %v417 = vpop.f32.mrb[0].mxu0
        %v418 = vadd.f32 %v372, %v417
        %v419 = vpop.f32.mrb[0].mxu0
        %v420 = vadd.f32 %v372, %v419
        %v421 = vpop.f32.mrb[0].mxu0
        %v422 = vpop.f32.mrb[0].mxu0
        %423 = vdwg.mxu0
        %424 = vrot.lane.b32.xlu0 %v316, 1
        %v425 = vpop.permute.xlu0 %424
        %426 = vrot.lane.b32.xlu0 %v317, 1
        %v427 = vpop.permute.xlu0 %426
        %vm428 = vcmask 7168
        %v429 = vsel %vm428, %v425, %v427
        %vm431 = vcmask 7168
        %v433 = vsel %vm431, 0, %v425
        %v436 = vsel %vm431, %v427, 0
        %v440 = vunpack.c.l.s4 1983009808
        %v441 = vunpack.c.0.s8 %v440
        %v442 = vlaneseq
        %v443 = vshrl.u32 %v442, 7
        %v444 = vsub.s32 %v441, %v443
        %v445 = vrot.slane %v311, %v444
        %v446 = vcombine.high %v445, %v445
        %v448 = vpack.i.b16 %v445, %v445
        %v450 = vlaneseq
        %v451 = vshrl.u32 %v450, 7
        %v452 = vsub.s32 0, %v451
        %v453 = vrot.slane %v448, %v452
        %v455 = vpack.i.b16 %v446, %v446
        %v457 = vlaneseq
        %v458 = vshrl.u32 %v457, 7
        %v459 = vsub.s32 0, %v458
        %v460 = vrot.slane %v455, %v459
        %v461 = vmul.bf16 %v433, %v453
        %v462 = vmul.bf16 %v429, %v460
        %v463 = vshrl.u32 %v445, 16
        %v464 = vpack.i.b16 %v463, %v463
        %v466 = vlaneseq
        %v467 = vshrl.u32 %v466, 7
        %v468 = vsub.s32 0, %v467
        %v469 = vrot.slane %v464, %v468
        %v470 = vshrl.u32 %v446, 16
        %v471 = vpack.i.b16 %v470, %v470
        %v473 = vlaneseq
        %v474 = vshrl.u32 %v473, 7
        %v475 = vsub.s32 0, %v474
        %v476 = vrot.slane %v471, %v475
        %479 = vrot.lane.b32.xlu0 %v469, 1
        %v480 = vpop.permute.xlu0 %479
        %481 = vrot.lane.b32.xlu0 %v476, 1
        %v482 = vpop.permute.xlu0 %481
        %v483 = vsel %vm428, %v480, %v482
        %v487 = vmul.bf16 %v433, %v480
        %v488 = vmul.bf16 %v429, %v483
        %v489 = vmul.bf16 %v436, %v482
        %v490 = vlaneseq
        %v491 = vshrl.u32 %v490, 7
        %v492 = vsub.s32 1, %v491
        %v493 = vrot.slane %v448, %v492
        %v494 = vlaneseq
        %v495 = vshrl.u32 %v494, 7
        %v496 = vsub.s32 1, %v495
        %v497 = vrot.slane %v455, %v496
        %500 = vrot.lane.b32.xlu0 %v493, 2
        %v501 = vpop.permute.xlu0 %500
        %502 = vrot.lane.b32.xlu0 %v497, 2
        %v503 = vpop.permute.xlu0 %502
        %vm504 = vcmask 15360
        %v505 = vsel %vm504, %v501, %v503
        %v509 = vmul.bf16 %v433, %v501
        %v510 = vmul.bf16 %v429, %v505
        %v511 = vmul.bf16 %v436, %v503
        %v515 = vrot.slane %v487, 6
        %v516 = vrot.slane %v488, 6
        %v517 = vrot.slane %v489, 6
        %518 = vrot.lane.b32.xlu0 %v515, 127
        %v519 = vpop.permute.xlu0 %518
        %520 = vrot.lane.b32.xlu0 %v516, 127
        %v521 = vpop.permute.xlu0 %520
        %522 = vrot.lane.b32.xlu0 %v517, 127
        %v523 = vpop.permute.xlu0 %522
        %vm524 = vcmask 1039360
        %v525 = vsel %vm524, %v519, %v521
        %v526 = vsel %vm524, %v521, %v523
        %v530 = vrot.slane %v509, 4
        %v531 = vrot.slane %v510, 4
        %v532 = vrot.slane %v511, 4
        %533 = vrot.lane.b32.xlu0 %v530, 126
        %v534 = vpop.permute.xlu0 %533
        %535 = vrot.lane.b32.xlu0 %v531, 126
        %v536 = vpop.permute.xlu0 %535
        %537 = vrot.lane.b32.xlu0 %v532, 126
        %v538 = vpop.permute.xlu0 %537
        %vm539 = vcmask 1031168
        %v540 = vsel %vm539, %v534, %v536
        %v541 = vsel %vm539, %v536, %v538
        %v544 = vsel %vm358, %v461, %v525
        %v547 = vsel %vm358, %v462, %v526
        %v549 = vsel %vm364, %v544, %v540
        %v551 = vsel %vm364, %v547, %v541
        %553 = vset.pattern.permute.xlu0 0
        %554 = vperm.xlu0 %553, %v309
        %v555 = vpop.permute.xlu0 %554
        %v558 = vsel %vm374, %v306, 0
        %v560 = vsel %vm378, %v549, 0
        %v562 = vsel %vm378, %v551, 0
        %564 = vmatprep.subr.bf16.mxu0 %v562
        %565 = vmatpush1.bf16.msra.mxu0 %v560
        %566 = vmatprep.subr.bf16.mxu0 0
        %567 = vmatpush1.bf16.msra.mxu0 0
        %568 = vmatprep.subr.bf16.mxu0 0
        %569 = vmatpush1.bf16.msra.mxu0 0
        %570 = vmatprep.subr.bf16.mxu0 0
        %571 = vmatpush1.bf16.msra.mxu0 0
        %572 = vmatprep.subr.bf16.mxu0 0
        %573 = vmatpush1.bf16.msra.mxu0 0
        %574 = vmatprep.subr.bf16.mxu0 0
        %575 = vmatpush1.bf16.msra.mxu0 0
        %576 = vmatprep.subr.bf16.mxu0 0
        %577 = vmatpush1.bf16.msra.mxu0 0
        %578 = vmatprep.subr.bf16.mxu0 0
        %579 = vmatpush1.bf16.msra.mxu0 0
        %580 = vmatprep.subr.bf16.mxu0 0
        %581 = vmatpush1.bf16.msra.mxu0 0
        %582 = vmatprep.subr.bf16.mxu0 0
        %583 = vmatpush1.bf16.msra.mxu0 0
        %584 = vmatprep.subr.bf16.mxu0 0
        %585 = vmatpush1.bf16.msra.mxu0 0
        %586 = vmatprep.subr.bf16.mxu0 0
        %587 = vmatpush1.bf16.msra.mxu0 0
        %588 = vmatprep.subr.bf16.mxu0 0
        %589 = vmatpush1.bf16.msra.mxu0 0
        %590 = vmatprep.subr.bf16.mxu0 0
        %591 = vmatpush1.bf16.msra.mxu0 0
        %592 = vmatprep.subr.bf16.mxu0 0
        %593 = vmatpush1.bf16.msra.mxu0 0
        %594 = vmatprep.subr.bf16.mxu0 0
        %595 = vmatpush1.bf16.msra.mxu0 0
        %596 = vmatprep.mubr.bf16.mxu0 0
        %597 = vmatmul.mubr.bf16.gmra.mrb[0].mxu0 %v558
        %v598 = vpop.f32.mrb[0].mxu0
        %v599 = vadd.f32 %v555, %v598
        %v600 = vpop.f32.mrb[0].mxu0
        %v601 = vadd.f32 %v555, %v600
        %v602 = vpop.f32.mrb[0].mxu0
        %v603 = vpop.f32.mrb[0].mxu0
        %604 = vdwg.mxu0
        %v605 = vpack.c.bf16 %v418, %v418
        %v606 = vpack.c.bf16 %v420, %v420
        %v607 = vpack.c.bf16 %v599, %v599
        %v608 = vpack.c.bf16 %v601, %v601
        %611 = vrot.lane.b32.xlu0 %v605, 1
        %v612 = vpop.permute.xlu0 %611
        %613 = vrot.lane.b32.xlu0 %v606, 1
        %v614 = vpop.permute.xlu0 %613
        %v615 = vsel %vm428, %v612, %v614
        %v618 = vsel %vm431, 0, %v612
        %v621 = vsel %vm431, %v614, 0
        %625 = vrot.lane.b32.xlu0 %v607, 16
        %v626 = vpop.permute.xlu0 %625
        %627 = vrot.lane.b32.xlu0 %v608, 16
        %v628 = vpop.permute.xlu0 %627
        %v629 = vsel %vm324, %v626, %v628
        %v631 = vsel %vm326, 0, %v626
        %v633 = vsel %vm326, %v628, 0
        %v634 = vmul.bf16 %v618, %v453
        %v635 = vmul.bf16 %v615, %v460
        %v636 = vmul.bf16 %v618, %v480
        %v637 = vmul.bf16 %v615, %v483
        %v638 = vmul.bf16 %v621, %v482
        %v639 = vmul.bf16 %v618, %v501
        %v640 = vmul.bf16 %v615, %v505
        %v641 = vmul.bf16 %v621, %v503
        %v645 = vrot.slane %v636, 4
        %v646 = vrot.slane %v637, 4
        %v647 = vrot.slane %v638, 4
        %648 = vrot.lane.b32.xlu0 %v645, 127
        %v649 = vpop.permute.xlu0 %648
        %650 = vrot.lane.b32.xlu0 %v646, 127
        %v651 = vpop.permute.xlu0 %650
        %652 = vrot.lane.b32.xlu0 %v647, 127
        %v653 = vpop.permute.xlu0 %652
        %v654 = vsel %vm524, %v649, %v651
        %v655 = vsel %vm524, %v651, %v653
        %659 = vrot.lane.b32.xlu0 %v639, 126
        %v660 = vpop.permute.xlu0 %659
        %661 = vrot.lane.b32.xlu0 %v640, 126
        %v662 = vpop.permute.xlu0 %661
        %663 = vrot.lane.b32.xlu0 %v641, 126
        %v664 = vpop.permute.xlu0 %663
        %v665 = vsel %vm539, %v660, %v662
        %v666 = vsel %vm539, %v662, %v664
        %v668 = vrot.slane %v631, 4
        %v669 = vrot.slane %v629, 4
        %671 = vrot.lane.b32.xlu0 %v631, 112
        %v672 = vpop.permute.xlu0 %671
        %673 = vrot.lane.b32.xlu0 %v629, 112
        %v674 = vpop.permute.xlu0 %673
        %675 = vrot.lane.b32.xlu0 %v633, 112
        %v676 = vpop.permute.xlu0 %675
        %v677 = vsel %vm343, %v672, %v674
        %v678 = vsel %vm343, %v674, %v676
        %v679 = vrot.slane %v633, 4
        %680 = vrot.lane.b32.xlu0 %v668, 96
        %v681 = vpop.permute.xlu0 %680
        %682 = vrot.lane.b32.xlu0 %v669, 96
        %v683 = vpop.permute.xlu0 %682
        %684 = vrot.lane.b32.xlu0 %v679, 96
        %v685 = vpop.permute.xlu0 %684
        %v686 = vsel %vm355, %v681, %v683
        %v687 = vsel %vm355, %v683, %v685
        %v690 = vsel %vm364, %v634, %v654
        %v694 = vsel %vm364, %v635, %v655
        %v698 = vsel %vm364, %v665, %v668
        %v702 = vsel %vm364, %v666, %v669
        %v706 = vsel %vm364, %v677, %v686
        %v710 = vsel %vm364, %v678, %v687
        %713 = vset.pattern.permute.xlu0 0
        %714 = vperm.xlu0 %713, %v310
        %v715 = vpop.permute.xlu0 %714
        %vm717 = vcmask 392192
        %v719 = vsel %vm717, %v307, 0
        %721 = vmatprep.subr.bf16.mxu0 %v694
        %722 = vmatpush1.bf16.msra.mxu0 %v690
        %723 = vmatprep.subr.bf16.mxu0 %v702
        %724 = vmatpush1.bf16.msra.mxu0 %v698
        %725 = vmatprep.subr.bf16.mxu0 %v710
        %726 = vmatpush1.bf16.msra.mxu0 %v706
        %727 = vmatprep.subr.bf16.mxu0 0
        %728 = vmatpush1.bf16.msra.mxu0 0
        %729 = vmatprep.subr.bf16.mxu0 0
        %730 = vmatpush1.bf16.msra.mxu0 0
        %731 = vmatprep.subr.bf16.mxu0 0
        %732 = vmatpush1.bf16.msra.mxu0 0
        %733 = vmatprep.subr.bf16.mxu0 0
        %734 = vmatpush1.bf16.msra.mxu0 0
        %735 = vmatprep.subr.bf16.mxu0 0
        %736 = vmatpush1.bf16.msra.mxu0 0
        %737 = vmatprep.subr.bf16.mxu0 0
        %738 = vmatpush1.bf16.msra.mxu0 0
        %739 = vmatprep.subr.bf16.mxu0 0
        %740 = vmatpush1.bf16.msra.mxu0 0
        %741 = vmatprep.subr.bf16.mxu0 0
        %742 = vmatpush1.bf16.msra.mxu0 0
        %743 = vmatprep.subr.bf16.mxu0 0
        %744 = vmatpush1.bf16.msra.mxu0 0
        %745 = vmatprep.subr.bf16.mxu0 0
        %746 = vmatpush1.bf16.msra.mxu0 0
        %747 = vmatprep.subr.bf16.mxu0 0
        %748 = vmatpush1.bf16.msra.mxu0 0
        %749 = vmatprep.subr.bf16.mxu0 0
        %750 = vmatpush1.bf16.msra.mxu0 0
        %751 = vmatprep.subr.bf16.mxu0 0
        %752 = vmatpush1.bf16.msra.mxu0 0
        %753 = vmatprep.mubr.bf16.mxu0 0
        %754 = vmatmul.mubr.bf16.gmra.mrb[0].mxu0 %v719
        %v755 = vpop.f32.mrb[0].mxu0
        %v756 = vadd.f32 %v715, %v755
        %v757 = vpop.f32.mrb[0].mxu0
        %v758 = vadd.f32 %v715, %v757
        %v759 = vpop.f32.mrb[0].mxu0
        %v760 = vpop.f32.mrb[0].mxu0
        %761 = vdwg.mxu0
        %762 = vst [vmem:[%s298] sm:$0xff] %v756
        %763 = vst [vmem:[%s298 + $0x8] sm:$0xff] %v758
        %s764 = sand.u32 %s203, 1
        %s765 = scalar_lea.sflag [#allocation3], %s764
        %s766 = sand.u32 %s203, 1
        %s767 = smul.addr %s766, 16
        %s768 = scalar_lea.vmem [#allocation2], %s767
        // Predicated region
        $region53: #{tpu_custom_call.1} parent=51 // pred_check
          %p769 = pneg %p213
        $region54: #{tpu_custom_call.1} parent=51 // pred_check_branch
          %771 = sbr.rel (%p769) target = $region56
        $region55: #{tpu_custom_call.1} parent=51 // pred_region
          %s773 = ssub.s32 256, 256
          %774 = vsyncadd %s765, %s773
          %s775 = smul.addr %s22, 2
          %s776 = smul.addr %s775, 128
          %s777 = scalar_lea.hbm %s8, %s776
          %s779 = sshll.u32 %s768, 4
          %s780 = int_to_ptr.vmem [resolvable:$true] %s779
          %782 = dma.vmem_to_hbm [thread:$0]  %s780, 256, %s777, %s765
        $region56: #{tpu_custom_call.1} parent=51 // pred_fallthru
          _
      $region52: #{tpu_custom_call.1} parent=5 // pred_fallthru
        _
      %p783 = scmp.le.s32.totalorder 2, %s17
      // Predicated region
      $region57: #{tpu_custom_call.1} parent=5 // pred_check
        %p784 = pneg %p783
      $region58: #{tpu_custom_call.1} parent=5 // pred_check_branch
        %786 = sbr.rel (%p784) target = $region60
      $region59: #{tpu_custom_call.1} parent=5 // pred_region
        %s787 = ssub.s32 %s17, 2
        // Predicated region
        $region61: #{tpu_custom_call.1} parent=59 // pred_check
          %p788 = pneg %p219
        $region62: #{tpu_custom_call.1} parent=59 // pred_check_branch
          %790 = sbr.rel (%p788) target = $region64
        $region63: #{tpu_custom_call.1} parent=59 // pred_region
          %s791 = sand.u32 %s204, 1
          %s792 = scalar_lea.sflag [#allocation3], %s791
          %s793 = sand.u32 %s204, 1
          %s794 = smul.addr %s793, 16
          %s795 = scalar_lea.vmem [#allocation2], %s794
          %796 = dma.done %s792, 256
        $region64: #{tpu_custom_call.1} parent=59 // pred_fallthru
          _
      $region60: #{tpu_custom_call.1} parent=5 // pred_fallthru
        _
    $region6: #{tpu_custom_call.1} parent=1 // loop_footer
      %s21 = sadd.s32 1, %s17
    $region7: #{tpu_custom_call.1} parent=1 // loop_footer_branch
      %16 = sbr.rel target = $region3
    $region8: #{tpu_custom_call.1} parent=1 // loop_exit
      _
    %797 = vsyncpa [#allocation3], 1
    %s798 = scalar_lea.sflag [#allocation3], 1
    %799 = vsyncpa %s798, 1

</llo_original>
